<compile_context>
chip_gen: v6e
topology: v6e:2x2x1
jax: 0.10.0
libtpu: 0.0.40
codegen_flags: <defaults>
</compile_context>

<pallas_src>
import functools

import jax
import jax.numpy as jnp
from jax.experimental import pallas as pl
from jax.experimental.pallas import tpu as pltpu


# ----------------------------------------------------------------------------
# Pallas kernel: one lane-dense matmul + bias (+ residual) (+ ReLU)
# ----------------------------------------------------------------------------
def _matmul_bias_kernel(p_ref, w_ref, b_ref, *rest, relu, has_res):
    if has_res:
        res_ref, o_ref = rest
    else:
        (o_ref,) = rest

    # (M_TILE, KC) @ (KC, COUT_TILE) on the MXU, f32 accumulation.
    acc = jnp.dot(p_ref[...], w_ref[0], preferred_element_type=jnp.float32)
    out = acc + b_ref[...]                      # folded BN shift (f32)
    if has_res:
        out = out + res_ref[...].astype(jnp.float32)
    if relu:
        out = jnp.maximum(out, 0.0)
    o_ref[...] = out.astype(o_ref.dtype)


# ----------------------------------------------------------------------------
# Helpers
# ----------------------------------------------------------------------------
def _round_up(x, m):
    return (x + m - 1) // m * m


def _pick_cout_tile(cout):
    """128 on v5e / small Cout, 256 on 256-wide-MXU chips for deep layers."""
    if cout < 256:
        return 128
    try:
        kind = jax.devices()[0].device_kind.lower()
    except Exception:
        kind = ""
    if "v5e" in kind or "v5 lite" in kind or "v5lite" in kind:
        return 128
    return 256


def _im2col(x_nhwc, K, stride, pad, extra=None):
    """im2col directly into (N, Ho*Wo, K*K*C [+ Ce]) — layout plumbing only.

    `extra` (N, Ho, Wo, Ce) is appended along the last axis (used to fuse the
    1x1 strided downsample conv into the same matmul).
    """
    N, H, W, C = x_nhwc.shape
    xp = jnp.pad(x_nhwc, ((0, 0), (pad, pad), (pad, pad), (0, 0)))
    Ho = (H + 2 * pad - K) // stride + 1
    Wo = (W + 2 * pad - K) // stride + 1
    cols = []
    for kh in range(K):
        for kw in range(K):
            cols.append(
                xp[:,
                   kh:kh + (Ho - 1) * stride + 1:stride,
                   kw:kw + (Wo - 1) * stride + 1:stride,
                   :]
            )
    if extra is not None:
        cols.append(extra)
    patches = jnp.concatenate(cols, axis=-1)            # (N, Ho, Wo, KC)
    KC = patches.shape[-1]
    return patches.reshape(N, Ho * Wo, KC), Ho, Wo


# ----------------------------------------------------------------------------
# pallas_call wrapper: (M, KC) @ (KC, Cout) + bias [+ residual] [+ relu]
# ----------------------------------------------------------------------------
def matmul_bias_act(patches2d, w2d, bias, *, relu, residual=None,
                    out_dtype=jnp.float32):
    M, KC = patches2d.shape
    Cout = w2d.shape[-1]

    COUT_TILE = _pick_cout_tile(Cout)
    COp = _round_up(Cout, COUT_TILE)
    n_ct = COp // COUT_TILE

    # Divisor-aware, 8-aligned M tile (target ~512 rows) -> no padded-row work
    # for typical ResNet shapes, lane-dense output stores along Cout.
    target = 512
    n_mt = max(1, -(-M // target))
    M_TILE = _round_up(-(-M // n_mt), 8)
    Mp = _round_up(M, M_TILE)

    # --- layout plumbing (all FLOPs stay in the kernel) ----------------------
    p = patches2d.astype(jnp.bfloat16)
    if Mp != M:
        p = jnp.pad(p, ((0, Mp - M), (0, 0)))

    w = w2d.astype(jnp.float32)
    if COp != Cout:
        w = jnp.pad(w, ((0, 0), (0, COp - Cout)))
    # (KC, COp) -> (n_ct, KC, COUT_TILE): each weight block is a contiguous slab.
    w = w.astype(jnp.bfloat16).reshape(KC, n_ct, COUT_TILE).transpose(1, 0, 2)

    b = jnp.pad(bias.reshape(1, Cout).astype(jnp.float32),
                ((0, 0), (0, COp - Cout)))

    args = [p, w, b]
    in_specs = [
        pl.BlockSpec((M_TILE, KC), lambda m, c: (m, 0)),
        pl.BlockSpec((1, KC, COUT_TILE), lambda m, c: (c, 0, 0)),
        pl.BlockSpec((1, COUT_TILE), lambda m, c: (0, c)),
    ]

    has_res = residual is not None
    if has_res:
        r = residual.astype(jnp.bfloat16)
        r = jnp.pad(r, ((0, Mp - M), (0, COp - Cout)))
        args.append(r)
        in_specs.append(pl.BlockSpec((M_TILE, COUT_TILE), lambda m, c: (m, c)))

    out_itemsize = jnp.dtype(out_dtype).itemsize

    # Double-buffered per-step working set -> sized VMEM limit (with headroom).
    ws = 2 * (M_TILE * KC * 2 + KC * COUT_TILE * 2 + COUT_TILE * 4
              + M_TILE * COUT_TILE * out_itemsize
              + (M_TILE * COUT_TILE * 2 if has_res else 0))
    vmem_limit = int(min(100 * 2**20, max(32 * 2**20, 2 * ws)))

    flops = 2 * Mp * KC * COp
    bytes_accessed = int(sum(int(a.size) * a.dtype.itemsize for a in args)
                         + Mp * COp * out_itemsize)
    cost = pl.CostEstimate(flops=int(flops), transcendentals=0,
                           bytes_accessed=bytes_accessed)

    kernel = functools.partial(_matmul_bias_kernel, relu=relu, has_res=has_res)

    out = pl.pallas_call(
        kernel,
        out_shape=jax.ShapeDtypeStruct((Mp, COp), out_dtype),
        grid=(Mp // M_TILE, n_ct),
        in_specs=in_specs,
        out_specs=pl.BlockSpec((M_TILE, COUT_TILE), lambda m, c: (m, c)),
        compiler_params=pltpu.CompilerParams(
            dimension_semantics=("parallel", "parallel"),
            vmem_limit_bytes=vmem_limit),
        cost_estimate=cost,
    )(*args)

    if Mp != M or COp != Cout:
        out = out[:M, :Cout]
    return out


# ----------------------------------------------------------------------------
# BasicBlock wrapper (NCHW in / NCHW out, like PyTorch; eval-mode BN)
# ----------------------------------------------------------------------------
def _fold_bn(bn, eps=1e-5):
    gamma, beta, mean, var = bn
    scale = gamma / jnp.sqrt(var + eps)
    shift = beta - mean * scale
    return scale, shift


def basic_block_forward(x_nchw, params, stride):
    # TODO(synk): when stacking blocks, keep activations NHWC end-to-end and
    #             hoist these transposes to network entry/exit.
    x = jnp.transpose(x_nchw, (0, 2, 3, 1)).astype(jnp.bfloat16)   # NHWC bf16
    N, H, W, Cin = x.shape
    Cout = params["w1"].shape[-1]

    sc1, sh1 = _fold_bn(params["bn1"])
    sc2, sh2 = _fold_bn(params["bn2"])

    # Fold BN scale into the weights (f32; bf16 cast happens in the wrapper).
    w1s = (params["w1"] * sc1).reshape(9 * Cin, Cout)
    w2s = (params["w2"] * sc2).reshape(9 * Cout, Cout)

    # conv1(3x3, stride) + bn1 + relu  -> bf16 (feeds conv2's im2col directly)
    p1, Ho, Wo = _im2col(x, 3, stride, 1)
    out1 = matmul_bias_act(p1.reshape(N * Ho * Wo, 9 * Cin), w1s, sh1,
                           relu=True, out_dtype=jnp.bfloat16)
    out1 = out1.reshape(N, Ho, Wo, Cout)

    if "w_ds" in params:
        # Fuse the 1x1 strided downsample conv + BN into conv2's matmul by
        # concatenating along the contraction axis.
        sc_d, sh_d = _fold_bn(params["bn_ds"])
        wds_s = (params["w_ds"] * sc_d).reshape(Cin, Cout)
        xs = x[:, :(Ho - 1) * stride + 1:stride,
               :(Wo - 1) * stride + 1:stride, :]                   # (N,Ho,Wo,Cin)
        p2, _, _ = _im2col(out1, 3, 1, 1, extra=xs)                # KC = 9*Cout+Cin
        w_cat = jnp.concatenate([w2s, wds_s], axis=0)
        out = matmul_bias_act(p2.reshape(N * Ho * Wo, 9 * Cout + Cin), w_cat,
                              sh2 + sh_d, relu=True, out_dtype=jnp.float32)
    else:
        p2, _, _ = _im2col(out1, 3, 1, 1)
        identity = x.reshape(N * H * W, Cin)        # Cin == Cout, stride == 1
        out = matmul_bias_act(p2.reshape(N * Ho * Wo, 9 * Cout), w2s, sh2,
                              relu=True, residual=identity, out_dtype=jnp.float32)

    return jnp.transpose(out.reshape(N, Ho, Wo, Cout), (0, 3, 1, 2))   # NCHW


# ----------------------------------------------------------------------------
# Pure-JAX f32 reference for correctness check
# ----------------------------------------------------------------------------
def _conv_ref(x_nhwc, w, stride, pad):
    return jax.lax.conv_general_dilated(
        x_nhwc, w, (stride, stride), [(pad, pad), (pad, pad)],
        dimension_numbers=("NHWC", "HWIO", "NHWC"),
    )


def basic_block_ref(x_nchw, params, stride):
    x = jnp.transpose(x_nchw, (0, 2, 3, 1))
    sc1, sh1 = _fold_bn(params["bn1"])
    out = jnp.maximum(_conv_ref(x, params["w1"], stride, 1) * sc1 + sh1, 0.0)
    if "w_ds" in params:
        scd, shd = _fold_bn(params["bn_ds"])
        identity = _conv_ref(x, params["w_ds"], stride, 0) * scd + shd
    else:
        identity = x
    sc2, sh2 = _fold_bn(params["bn2"])
    out = jnp.maximum(_conv_ref(out, params["w2"], 1, 1) * sc2 + sh2 + identity, 0.0)
    return jnp.transpose(out, (0, 3, 1, 2))


# ----------------------------------------------------------------------------
# Deterministic parameter construction + checks
# ----------------------------------------------------------------------------
def make_params(key, cin, cout, stride):
    ks = jax.random.split(key, 12)

    def bn(k):
        k1, k2, k3, k4 = jax.random.split(k, 4)
        gamma = 1.0 + 0.1 * jax.random.normal(k1, (cout,), jnp.float32)
        beta = 0.05 * jax.random.normal(k2, (cout,), jnp.float32)
        mean = 0.1 * jax.random.normal(k3, (cout,), jnp.float32)
        var = 0.5 + jnp.abs(jax.random.normal(k4, (cout,), jnp.float32))
        return (gamma, beta, mean, var)

    params = {
        "w1": 0.1 * jax.random.normal(ks[0], (3, 3, cin, cout), jnp.float32),
        "bn1": bn(ks[1]),
        "w2": 0.1 * jax.random.normal(ks[2], (3, 3, cout, cout), jnp.float32),
        "bn2": bn(ks[3]),
    }
    if stride != 1 or cin != cout:
        params["w_ds"] = 0.2 * jax.random.normal(ks[4], (1, 1, cin, cout), jnp.float32)
        params["bn_ds"] = bn(ks[5])
    return params


def _check(out, ref):
    # bf16 activations/weights on the MXU (f32 accumulation) -> loosened tol.
    abs_err = float(jnp.max(jnp.abs(out - ref)))
    rel_l2 = float(jnp.linalg.norm(out - ref) / (jnp.linalg.norm(ref) + 1e-12))
    assert abs_err < 1.5e-1 and rel_l2 < 2e-2, (abs_err, rel_l2)


if __name__ == "__main__":
    key = jax.random.PRNGKey(0)
    kx, kp1, kp2 = jax.random.split(key, 3)

    x = jax.random.normal(kx, (2, 4, 16, 16), jnp.float32)

    # Case 1: downsample path (stride=2, channel expansion 4 -> 8)
    params1 = make_params(kp1, cin=4, cout=8, stride=2)
    out1 = jax.block_until_ready(basic_block_forward(x, params1, stride=2))
    ref1 = basic_block_ref(x, params1, stride=2)
    assert out1.shape == (2, 8, 8, 8)
    _check(out1, ref1)

    # Case 2: identity path (stride=1, same channels)
    params2 = make_params(kp2, cin=4, cout=4, stride=1)
    out2 = jax.block_until_ready(basic_block_forward(x, params2, stride=1))
    ref2 = basic_block_ref(x, params2, stride=1)
    assert out2.shape == (2, 4, 16, 16)
    _check(out2, ref2)

    print("KERNEL_OK")
</pallas_src>

<mosaic_0001>
module attributes {stable_mosaic.version = 11 : i64} {
  func.func @_matmul_bias_kernel(%arg0: i32, %arg1: i32, %arg2: memref<128x36xbf16, #tpu.memory_space<vmem>>, %arg3: memref<1x36x128xbf16, #tpu.memory_space<vmem>>, %arg4: memref<1x128xf32, #tpu.memory_space<vmem>>, %arg5: memref<128x128xbf16, #tpu.memory_space<vmem>>) attributes {dimension_semantics = [#tpu.dimension_semantics<parallel>, #tpu.dimension_semantics<parallel>], iteration_bounds = array<i64: 1, 1>, scalar_prefetch = 0 : i64, scratch_operands = 0 : i64, tpu.core_type = #tpu.core_type<tc>, window_params = [{transform_indices = @transform_0, window_bounds = array<i64: 128, 36>}, {transform_indices = @transform_1, window_bounds = array<i64: 1, 36, 128>}, {transform_indices = @transform_2, window_bounds = array<i64: 1, 128>}, {transform_indices = @transform_3, window_bounds = array<i64: 128, 128>}]} {
    %c0 = arith.constant 0 : index
    %c0_0 = arith.constant 0 : index
    %0 = vector.load %arg2[%c0, %c0_0] : memref<128x36xbf16, #tpu.memory_space<vmem>>, vector<128x36xbf16>
    %c0_1 = arith.constant 0 : index
    %c0_2 = arith.constant 0 : index
    %c0_3 = arith.constant 0 : index
    %1 = vector.load %arg3[%c0_1, %c0_2, %c0_3] : memref<1x36x128xbf16, #tpu.memory_space<vmem>>, vector<1x36x128xbf16>
    %2 = vector.shape_cast %1 : vector<1x36x128xbf16> to vector<36x128xbf16>
    %cst = arith.constant dense<0.000000e+00> : vector<128x128xf32>
    %3 = tpu.matmul %0, %2, %cst {dimension_numbers = #tpu.dot_dimension_numbers<[1], [0], [0], [1], [0, 0, 1, 1], [], []>} : vector<128x36xbf16>, vector<36x128xbf16>, vector<128x128xf32> -> vector<128x128xf32>
    %c0_4 = arith.constant 0 : index
    %c0_5 = arith.constant 0 : index
    %4 = vector.load %arg4[%c0_4, %c0_5] : memref<1x128xf32, #tpu.memory_space<vmem>>, vector<1x128xf32>
    %5 = vector.broadcast %4 : vector<1x128xf32> to vector<128x128xf32>
    %6 = arith.addf %3, %5 : vector<128x128xf32>
    %cst_6 = arith.constant 0.000000e+00 : f32
    %7 = vector.broadcast %cst_6 : f32 to vector<128x128xf32>
    %8 = arith.maximumf %6, %7 : vector<128x128xf32>
    %9 = arith.truncf %8 : vector<128x128xf32> to vector<128x128xbf16>
    %c0_7 = arith.constant 0 : index
    %c0_8 = arith.constant 0 : index
    %10 = vector.load %arg5[%c0_7, %c0_8] : memref<128x128xbf16, #tpu.memory_space<vmem>>, vector<128x128xbf16>
    tpu.vector_store %arg5[%c0_7, %c0_8], %9 {strides = array<i32>} : memref<128x128xbf16, #tpu.memory_space<vmem>>, vector<128x128xbf16>,
    return
  }
  func.func @transform_0(%arg0: i32, %arg1: i32) -> (i32, i32) {
    %c0_i32 = arith.constant 0 : i32
    %c0_i32_0 = arith.constant 0 : i32
    return %arg0, %c0_i32 : i32, i32
  }
  func.func @transform_1(%arg0: i32, %arg1: i32) -> (i32, i32, i32) {
    %c0_i32 = arith.constant 0 : i32
    %c0_i32_0 = arith.constant 0 : i32
    %c0_i32_1 = arith.constant 0 : i32
    return %arg1, %c0_i32, %c0_i32_0 : i32, i32, i32
  }
  func.func @transform_2(%arg0: i32, %arg1: i32) -> (i32, i32) {
    %c0_i32 = arith.constant 0 : i32
    %c0_i32_0 = arith.constant 0 : i32
    return %c0_i32, %arg1 : i32, i32
  }
  func.func @transform_3(%arg0: i32, %arg1: i32) -> (i32, i32) {
    %c0_i32 = arith.constant 0 : i32
    return %arg0, %arg1 : i32, i32
  }
}

</mosaic_0001>

<llo_original>
// kernel: tpu_custom_call.1
$region0: #{tpu_custom_call.1}
  #allocation0 [shape = 'u32[]', space=smem, size = 0x4, offset = 0x4, fixed_abs, tag = 'smem constant byte address 0x4 - core index']
  #allocation1 [shape = 'u32[144,128]{1,0:T(1,128)}', space=vmem, size = 0x12000, scoped, tag = 'internal scratch']
  %s0 = inlined_call_operand.vmem [shape: bf16[128,36], index: 0, kind: input, shape index: {}]
  %s1 = inlined_call_operand.vmem [shape: bf16[1,36,128], index: 1, kind: input, shape index: {}]
  %s2 = inlined_call_operand.vmem [shape: f32[1,128], index: 2, kind: input, shape index: {}]
  %s3 = inlined_call_operand.hbm [shape: bf16[128,128], index: 3, kind: output, shape index: {}]
  %s4 = sld [smem:[#allocation0]]
  $region22: #{tpu_custom_call.1} parent=0
    _
  %s6 = ssub.s32 1, %s4
  %s7 = scalar_select 0, %s6, %s4
  $region1: #{tpu_custom_call.1} parent=0
    #allocation2 [shape = 'u8[32768]{0}', space=vmem, size = 0x8000, scoped, tag = 'output window, operand 0, single buffered']
    #allocation3 [shape = 's32[1]{0}', space=sflag, size = 0x4, scoped, tag = 'scoped memory for tpu_custom_call.1']
    %8 = vsyncpa [#allocation3], 0
    // Predicated region
    $region2: #{tpu_custom_call.1} parent=1 // pred_check
      _
    $region3: #{tpu_custom_call.1} parent=1 // pred_check_branch
      %10 = sbr.rel (0) target = $region5
    $region4: #{tpu_custom_call.1} parent=1 // pred_region
      _
    $region5: #{tpu_custom_call.1} parent=1 // pred_fallthru
      _
    // Predicated region
    $region6: #{tpu_custom_call.1} parent=1 // pred_check
      _
    $region7: #{tpu_custom_call.1} parent=1 // pred_check_branch
      %12 = sbr.rel (0) target = $region9
    $region8: #{tpu_custom_call.1} parent=1 // pred_region
      _
    $region9: #{tpu_custom_call.1} parent=1 // pred_fallthru
      _
    // Predicated region
    $region10: #{tpu_custom_call.1} parent=1 // pred_check
      _
    $region11: #{tpu_custom_call.1} parent=1 // pred_check_branch
      %14 = sbr.rel (0) target = $region13
    $region12: #{tpu_custom_call.1} parent=1 // pred_region
      _
    $region13: #{tpu_custom_call.1} parent=1 // pred_fallthru
      _
    %v16 = vld [vmem:[%s0] sm:$0xf]
    %v17 = vld [vmem:[%s0 + $0x4] sm:$0xf]
    %v18 = vld [vmem:[%s0 + $0x8] sm:$0xf]
    %v19 = vld [vmem:[%s0 + $0xc] sm:$0xf]
    %v20 = vld [vmem:[%s0 + $0x10] sm:$0xf]
    %v21 = vld [vmem:[%s0 + $0x14] sm:$0xf]
    %v22 = vld [vmem:[%s0 + $0x18] sm:$0xf]
    %v23 = vld [vmem:[%s0 + $0x1c] sm:$0xf]
    %v24 = vld [vmem:[%s0 + $0x20] sm:$0xf]
    %v25 = vld [vmem:[%s0 + $0x24] sm:$0xf]
    %v26 = vld [vmem:[%s0 + $0x28] sm:$0xf]
    %v27 = vld [vmem:[%s0 + $0x2c] sm:$0xf]
    %v28 = vld [vmem:[%s0 + $0x30] sm:$0xf]
    %v29 = vld [vmem:[%s0 + $0x34] sm:$0xf]
    %v30 = vld [vmem:[%s0 + $0x38] sm:$0xf]
    %v31 = vld [vmem:[%s0 + $0x3c] sm:$0xf]
    %v32 = vld [vmem:[%s1] sm:$0xf]
    %v33 = vld [vmem:[%s1 + $0x4] sm:$0xf]
    %v34 = vld [vmem:[%s1 + $0x8] sm:$0xf]
    %v35 = vld [vmem:[%s1 + $0xc] sm:$0xf]
    %v36 = vld [vmem:[%s1 + $0x10] sm:$0x3]
    %v37 = vld [vmem:[%s2] sm:$0x1]
    %v39 = vlaneseq
    %v40 = vshrl.u32 %v39, 7
    %v41 = vsub.s32 0, %v40
    %v42 = vrot.slane %v37, %v41
    %v60 = vunpack.c.l.b16 %v16
    %v61 = vunpack.c.l.b16 %v17
    %v62 = vunpack.c.l.b16 %v18
    %v63 = vunpack.c.l.b16 %v19
    %v64 = vunpack.c.l.b16 %v20
    %v65 = vunpack.c.l.b16 %v21
    %v66 = vunpack.c.l.b16 %v22
    %v67 = vunpack.c.l.b16 %v23
    %v68 = vunpack.c.l.b16 %v24
    %v69 = vunpack.c.l.b16 %v25
    %v70 = vunpack.c.l.b16 %v26
    %v71 = vunpack.c.l.b16 %v27
    %v72 = vunpack.c.l.b16 %v28
    %v73 = vunpack.c.l.b16 %v29
    %v74 = vunpack.c.l.b16 %v30
    %v75 = vunpack.c.l.b16 %v31
    %v76 = vpack.c.b16 %v61, %v60
    %v77 = vpack.c.b16 %v63, %v62
    %v78 = vpack.c.b16 %v65, %v64
    %v79 = vpack.c.b16 %v67, %v66
    %v80 = vpack.c.b16 %v69, %v68
    %v81 = vpack.c.b16 %v71, %v70
    %v82 = vpack.c.b16 %v73, %v72
    %v83 = vpack.c.b16 %v75, %v74
    %v89 = vunpack.c.l.b16 %v32
    %v90 = vunpack.c.l.b16 %v33
    %v91 = vunpack.c.l.b16 %v34
    %v92 = vunpack.c.l.b16 %v35
    %v93 = vunpack.c.l.b16 %v36
    %v94 = vpack.c.b16 %v90, %v89
    %v95 = vpack.c.b16 %v92, %v91
    %v96 = vpack.c.b16 %v93, %v93
    %vm99 = vcmask 293888
    %v101 = vsel %vm99, %v76, 0
    %v104 = vsel %vm99, %v77, 0
    %v107 = vsel %vm99, %v78, 0
    %v110 = vsel %vm99, %v79, 0
    %v113 = vsel %vm99, %v80, 0
    %v116 = vsel %vm99, %v81, 0
    %v119 = vsel %vm99, %v82, 0
    %v122 = vsel %vm99, %v83, 0
    %vm124 = vcmask 1041408
    %v126 = vsel %vm124, %v96, 0
    %128 = vmatprep.subr.bf16.mxu0 0
    %129 = vmatpush1.bf16.msra.mxu0 0
    %130 = vmatprep.subr.bf16.mxu0 0
    %131 = vmatpush1.bf16.msra.mxu0 0
    %132 = vmatprep.subr.bf16.mxu0 0
    %133 = vmatpush1.bf16.msra.mxu0 0
    %134 = vmatprep.subr.bf16.mxu0 0
    %135 = vmatpush1.bf16.msra.mxu0 0
    %136 = vmatprep.subr.bf16.mxu0 0
    %137 = vmatpush1.bf16.msra.mxu0 0
    %138 = vmatprep.subr.bf16.mxu0 0
    %139 = vmatpush1.bf16.msra.mxu0 %v126
    %140 = vmatprep.subr.bf16.mxu0 0
    %141 = vmatpush1.bf16.msra.mxu0 %v95
    %142 = vmatprep.subr.bf16.mxu0 0
    %143 = vmatpush1.bf16.msra.mxu0 %v94
    %144 = vmatprep.subr.bf16.mxu0 0
    %145 = vmatpush2.bf16.msra.mxu0 0
    %146 = vmatprep.subr.bf16.mxu0 0
    %147 = vmatpush2.bf16.msra.mxu0 0
    %148 = vmatprep.subr.bf16.mxu0 0
    %149 = vmatpush2.bf16.msra.mxu0 0
    %150 = vmatprep.subr.bf16.mxu0 0
    %151 = vmatpush2.bf16.msra.mxu0 0
    %152 = vmatprep.subr.bf16.mxu0 0
    %153 = vmatpush2.bf16.msra.mxu0 0
    %154 = vmatprep.subr.bf16.mxu0 0
    %155 = vmatpush2.bf16.msra.mxu0 0
    %156 = vmatprep.subr.bf16.mxu0 0
    %157 = vmatpush2.bf16.msra.mxu0 0
    %158 = vmatprep.subr.bf16.mxu0 0
    %159 = vmatpush2.bf16.msra.mxu0 0
    %160 = vmatprep.mubr.bf16.mxu0 0
    %161 = vmatmul.mubr.bf16.gmra.mxu0 %v101
    %v162 = vpop.f32.mrf.mxu0
    %v163 = vadd.f32 %v42, %v162
    %v164 = vpop.f32.mrf.mxu0
    %v165 = vpop.f32.mrf.mxu0
    %v166 = vadd.f32 %v42, %v165
    %v167 = vpop.f32.mrf.mxu0
    %168 = vmatprep.mubr.bf16.mxu0 0
    %169 = vmatmul.mubr.bf16.gmra.mxu0 %v104
    %v170 = vpop.f32.mrf.mxu0
    %v171 = vadd.f32 %v42, %v170
    %v172 = vpop.f32.mrf.mxu0
    %v173 = vpop.f32.mrf.mxu0
    %v174 = vadd.f32 %v42, %v173
    %v175 = vpop.f32.mrf.mxu0
    %176 = vmatprep.mubr.bf16.mxu0 0
    %177 = vmatmul.mubr.bf16.gmra.mxu0 %v107
    %v178 = vpop.f32.mrf.mxu0
    %v179 = vadd.f32 %v42, %v178
    %v180 = vpop.f32.mrf.mxu0
    %v181 = vpop.f32.mrf.mxu0
    %v182 = vadd.f32 %v42, %v181
    %v183 = vpop.f32.mrf.mxu0
    %184 = vmatprep.mubr.bf16.mxu0 0
    %185 = vmatmul.mubr.bf16.gmra.mxu0 %v110
    %v186 = vpop.f32.mrf.mxu0
    %v187 = vadd.f32 %v42, %v186
    %v188 = vpop.f32.mrf.mxu0
    %v189 = vpop.f32.mrf.mxu0
    %v190 = vadd.f32 %v42, %v189
    %v191 = vpop.f32.mrf.mxu0
    %192 = vmatprep.mubr.bf16.mxu0 0
    %193 = vmatmul.mubr.bf16.gmra.mxu0 %v113
    %v194 = vpop.f32.mrf.mxu0
    %v195 = vadd.f32 %v42, %v194
    %v196 = vpop.f32.mrf.mxu0
    %v197 = vpop.f32.mrf.mxu0
    %v198 = vadd.f32 %v42, %v197
    %v199 = vpop.f32.mrf.mxu0
    %200 = vmatprep.mubr.bf16.mxu0 0
    %201 = vmatmul.mubr.bf16.gmra.mxu0 %v116
    %v202 = vpop.f32.mrf.mxu0
    %v203 = vadd.f32 %v42, %v202
    %v204 = vpop.f32.mrf.mxu0
    %v205 = vpop.f32.mrf.mxu0
    %v206 = vadd.f32 %v42, %v205
    %v207 = vpop.f32.mrf.mxu0
    %208 = vmatprep.mubr.bf16.mxu0 0
    %209 = vmatmul.mubr.bf16.gmra.mxu0 %v119
    %v210 = vpop.f32.mrf.mxu0
    %v211 = vadd.f32 %v42, %v210
    %v212 = vpop.f32.mrf.mxu0
    %v213 = vpop.f32.mrf.mxu0
    %v214 = vadd.f32 %v42, %v213
    %v215 = vpop.f32.mrf.mxu0
    %216 = vmatprep.mubr.bf16.mxu0 0
    %217 = vmatmul.mubr.bf16.gmra.mxu0 %v122
    %v218 = vpop.f32.mrf.mxu0
    %v219 = vadd.f32 %v42, %v218
    %v220 = vpop.f32.mrf.mxu0
    %v221 = vpop.f32.mrf.mxu0
    %v222 = vadd.f32 %v42, %v221
    %v223 = vpop.f32.mrf.mxu0
    %224 = vdwg.mxu0
    %v225 = vmax.f32 %v163, 0.0
    %v226 = vmax.f32 %v166, 0.0
    %v227 = vmax.f32 %v171, 0.0
    %v228 = vmax.f32 %v174, 0.0
    %v229 = vmax.f32 %v179, 0.0
    %v230 = vmax.f32 %v182, 0.0
    %v231 = vmax.f32 %v187, 0.0
    %v232 = vmax.f32 %v190, 0.0
    %v233 = vmax.f32 %v195, 0.0
    %v234 = vmax.f32 %v198, 0.0
    %v235 = vmax.f32 %v203, 0.0
    %v236 = vmax.f32 %v206, 0.0
    %v237 = vmax.f32 %v211, 0.0
    %v238 = vmax.f32 %v214, 0.0
    %v239 = vmax.f32 %v219, 0.0
    %v240 = vmax.f32 %v222, 0.0
    %v241 = vpack.c.bf16 %v226, %v225
    %v242 = vpack.c.bf16 %v228, %v227
    %v243 = vpack.c.bf16 %v230, %v229
    %v244 = vpack.c.bf16 %v232, %v231
    %v245 = vpack.c.bf16 %v234, %v233
    %v246 = vpack.c.bf16 %v236, %v235
    %v247 = vpack.c.bf16 %v238, %v237
    %v248 = vpack.c.bf16 %v240, %v239
    %v257 = vunpack.c.l.b16 %v241
    %v258 = vunpack.c.h.b16 %v241
    %v259 = vunpack.c.l.b16 %v242
    %v260 = vunpack.c.h.b16 %v242
    %v261 = vunpack.c.l.b16 %v243
    %v262 = vunpack.c.h.b16 %v243
    %v263 = vunpack.c.l.b16 %v244
    %v264 = vunpack.c.h.b16 %v244
    %v265 = vunpack.c.l.b16 %v245
    %v266 = vunpack.c.h.b16 %v245
    %v267 = vunpack.c.l.b16 %v246
    %v268 = vunpack.c.h.b16 %v246
    %v269 = vunpack.c.l.b16 %v247
    %v270 = vunpack.c.h.b16 %v247
    %v271 = vunpack.c.l.b16 %v248
    %v272 = vunpack.c.h.b16 %v248
    %v273 = vpack.c.b16 %v257, %v257
    %v274 = vpack.c.b16 %v258, %v258
    %v275 = vpack.c.b16 %v259, %v259
    %v276 = vpack.c.b16 %v260, %v260
    %v277 = vpack.c.b16 %v261, %v261
    %v278 = vpack.c.b16 %v262, %v262
    %v279 = vpack.c.b16 %v263, %v263
    %v280 = vpack.c.b16 %v264, %v264
    %v281 = vpack.c.b16 %v265, %v265
    %v282 = vpack.c.b16 %v266, %v266
    %v283 = vpack.c.b16 %v267, %v267
    %v284 = vpack.c.b16 %v268, %v268
    %v285 = vpack.c.b16 %v269, %v269
    %v286 = vpack.c.b16 %v270, %v270
    %v287 = vpack.c.b16 %v271, %v271
    %v288 = vpack.c.b16 %v272, %v272
    %305 = vst [vmem:[#allocation2] sm:$0xf] %v273
    %306 = vst [vmem:[#allocation2 + $0x4] sm:$0xf] %v274
    %307 = vst [vmem:[#allocation2 + $0x8] sm:$0xf] %v275
    %308 = vst [vmem:[#allocation2 + $0xc] sm:$0xf] %v276
    %309 = vst [vmem:[#allocation2 + $0x10] sm:$0xf] %v277
    %310 = vst [vmem:[#allocation2 + $0x14] sm:$0xf] %v278
    %311 = vst [vmem:[#allocation2 + $0x18] sm:$0xf] %v279
    %312 = vst [vmem:[#allocation2 + $0x1c] sm:$0xf] %v280
    %313 = vst [vmem:[#allocation2 + $0x20] sm:$0xf] %v281
    %314 = vst [vmem:[#allocation2 + $0x24] sm:$0xf] %v282
    %315 = vst [vmem:[#allocation2 + $0x28] sm:$0xf] %v283
    %316 = vst [vmem:[#allocation2 + $0x2c] sm:$0xf] %v284
    %317 = vst [vmem:[#allocation2 + $0x30] sm:$0xf] %v285
    %318 = vst [vmem:[#allocation2 + $0x34] sm:$0xf] %v286
    %319 = vst [vmem:[#allocation2 + $0x38] sm:$0xf] %v287
    %320 = vst [vmem:[#allocation2 + $0x3c] sm:$0xf] %v288
    // Predicated region
    $region14: #{tpu_custom_call.1} parent=1 // pred_check
      _
    $region15: #{tpu_custom_call.1} parent=1 // pred_check_branch
      %322 = sbr.rel (0) target = $region17
    $region16: #{tpu_custom_call.1} parent=1 // pred_region
      %s324 = ssub.s32 1024, 1024
      %325 = vsyncadd [#allocation3], %s324
      %s326 = sshll.u32 [#allocation2], 4
      %s327 = int_to_ptr.vmem [resolvable:$true] %s326
      %332 = dma.vmem_to_hbm [thread:$0]  %s327, 1024, %s3, [#allocation3], 64, 64, 4
    $region17: #{tpu_custom_call.1} parent=1 // pred_fallthru
      _
    // Predicated region
    $region18: #{tpu_custom_call.1} parent=1 // pred_check
      _
    $region19: #{tpu_custom_call.1} parent=1 // pred_check_branch
      %334 = sbr.rel (0) target = $region21
    $region20: #{tpu_custom_call.1} parent=1 // pred_region
      %335 = dma.done [#allocation3], 1024
    $region21: #{tpu_custom_call.1} parent=1 // pred_fallthru
      _
    %336 = vsyncpa [#allocation3], 1

</llo_original>
